<compile_context>
chip_gen: v7x
topology: tpu7x:2x2x1
jax: 0.10.0
libtpu: 0.0.40
codegen_flags: <defaults>
</compile_context>

<pallas_src>
import jax
import jax.numpy as jnp
from jax import lax
from jax.experimental import pallas as pl
from jax.experimental.pallas import tpu as pltpu


def make_ffn_kernel(*, k0, pad0, k1, pad1, d_in, eps):
    """Build the fused LayerNorm -> Conv1d -> ReLU -> Conv1d -> residual kernel."""

    def kernel(x_ref, w1_ref, b1_ref, w2_ref, b2_ref, g_ref, be_ref, o_ref,
               *scratch):
        Bt, T, d_in_p = x_ref.shape
        d_hid_p = b1_ref.shape[-1]
        M = Bt * T

        si = 0
        if k0 > 1:
            ypad_ref = scratch[si]
            si += 1
        if k1 > 1:
            hpad_ref = scratch[si]
            si += 1

        # ---- LayerNorm over the real d_in channels (f32 statistics) ----
        x = x_ref[...].astype(jnp.float32)                     # (Bt, T, d_in_p)
        mean = jnp.sum(x, axis=-1, keepdims=True) * (1.0 / d_in)
        diff = x - mean
        if d_in_p != d_in:
            # padded channels of x are zero -> sum is exact; mask diff so the
            # variance only sees the real channels.
            lane = lax.broadcasted_iota(jnp.int32, (Bt, T, d_in_p), 2)
            diff = jnp.where(lane < d_in, diff, 0.0)
        var = jnp.sum(diff * diff, axis=-1, keepdims=True) * (1.0 / d_in)
        y = diff * lax.rsqrt(var + eps) * g_ref[...] + be_ref[...]

        # ---- Conv1d #1 (d_in -> d_hid): one wide-K bf16 matmul via im2col ----
        if k0 == 1:
            ycol = y.reshape(M, d_in_p).astype(jnp.bfloat16)
        else:
            if pad0 > 0:  # zero conv-halo rows of the padded scratch (tiny)
                zrow = jnp.zeros((Bt, pad0, d_in_p), ypad_ref.dtype)
                ypad_ref[:, :pad0, :] = zrow
                ypad_ref[:, pad0 + T:, :] = zrow
            ypad_ref[:, pad0:pad0 + T, :] = y
            ycol = jnp.concatenate(
                [ypad_ref[:, dt:dt + T, :].astype(jnp.bfloat16)
                 for dt in range(k0)],
                axis=-1).reshape(M, k0 * d_in_p)
        h = jnp.dot(ycol, w1_ref[...], preferred_element_type=jnp.float32)
        h = jnp.maximum(h + b1_ref[...], 0.0)                   # bias + ReLU

        # ---- Conv1d #2 (d_hid -> d_in) ----
        if k1 == 1:
            o2 = jnp.dot(h.astype(jnp.bfloat16), w2_ref[...],
                         preferred_element_type=jnp.float32)
        else:
            if pad1 > 0:
                zrow = jnp.zeros((Bt, pad1, d_hid_p), hpad_ref.dtype)
                hpad_ref[:, :pad1, :] = zrow
                hpad_ref[:, pad1 + T:, :] = zrow
            hpad_ref[:, pad1:pad1 + T, :] = h.reshape(Bt, T, d_hid_p)
            hcol = jnp.concatenate(
                [hpad_ref[:, dt:dt + T, :].astype(jnp.bfloat16)
                 for dt in range(k1)],
                axis=-1).reshape(M, k1 * d_hid_p)
            o2 = jnp.dot(hcol, w2_ref[...], preferred_element_type=jnp.float32)

        # bias + residual with ORIGINAL x (padded channels stay exactly zero).
        o = o2.reshape(Bt, T, d_in_p) + b2_ref[...] + x
        o_ref[...] = o.astype(o_ref.dtype)

    return kernel


def positionwise_ffn(x, w1_oik, b1, w2_oik, b2, gamma, beta, *, padding,
                     eps=1e-5, target_rows=512):
    """x: (B, T, d_in); PyTorch-layout conv weights w1_oik: (d_hid, d_in, k0),
    w2_oik: (d_in, d_hid, k1); b1: (d_hid,); b2, gamma, beta: (d_in,)."""
    B, T, d_in = x.shape
    d_hid, d_in_w, k0 = w1_oik.shape
    d_out2, d_hid_w, k1 = w2_oik.shape
    pad0, pad1 = padding
    assert d_in_w == d_in and d_hid_w == d_hid and d_out2 == d_in
    assert T + 2 * pad0 - k0 + 1 == T, "conv1 must preserve sequence length"
    assert T + 2 * pad1 - k1 + 1 == T, "conv2 must preserve sequence length"

    rup = lambda n: ((n + 127) // 128) * 128
    d_in_p, d_hid_p = rup(d_in), rup(d_hid)

    # Lane-pad channels to multiples of 128 (lane-dense loads/stores, full MXU K/N).
    x_p = x if d_in_p == d_in else jnp.pad(x, ((0, 0), (0, 0), (0, d_in_p - d_in)))

    # Conv weights (out,in,k) -> (k,in,out), zero-pad channels, flatten taps into
    # the contraction dim (K = k * C_in), cast to bf16 for the MXU.
    w1 = jnp.transpose(w1_oik, (2, 1, 0))
    w1 = jnp.pad(w1, ((0, 0), (0, d_in_p - d_in), (0, d_hid_p - d_hid)))
    w1_flat = w1.reshape(k0 * d_in_p, d_hid_p).astype(jnp.bfloat16)
    w2 = jnp.transpose(w2_oik, (2, 1, 0))
    w2 = jnp.pad(w2, ((0, 0), (0, d_hid_p - d_hid), (0, d_in_p - d_in)))
    w2_flat = w2.reshape(k1 * d_hid_p, d_in_p).astype(jnp.bfloat16)

    b1_p = jnp.pad(b1, (0, d_hid_p - d_hid)).astype(jnp.float32)[None, :]
    b2_p = jnp.pad(b2, (0, d_in_p - d_in)).astype(jnp.float32)[None, :]
    g_p = jnp.pad(gamma, (0, d_in_p - d_in)).astype(jnp.float32)[None, :]
    be_p = jnp.pad(beta, (0, d_in_p - d_in)).astype(jnp.float32)[None, :]

    # Fold batch rows into one block so each grid step has ~target_rows of M.
    cap = max(1, target_rows // T)
    Bt = 1
    for d in range(1, B + 1):
        if B % d == 0 and d <= cap:
            Bt = d
    grid = (B // Bt,)

    scratch = []
    if k0 > 1:
        scratch.append(pltpu.VMEM((Bt, T + 2 * pad0, d_in_p), jnp.float32))
    if k1 > 1:
        scratch.append(pltpu.VMEM((Bt, T + 2 * pad1, d_hid_p), jnp.float32))

    kernel = make_ffn_kernel(k0=k0, pad0=pad0, k1=k1, pad1=pad1,
                             d_in=d_in, eps=eps)

    out_p = pl.pallas_call(
        kernel,
        out_shape=jax.ShapeDtypeStruct((B, T, d_in_p), x.dtype),
        grid=grid,
        in_specs=[
            pl.BlockSpec((Bt, T, d_in_p), lambda b: (b, 0, 0)),
            pl.BlockSpec((k0 * d_in_p, d_hid_p), lambda b: (0, 0)),
            pl.BlockSpec((1, d_hid_p), lambda b: (0, 0)),
            pl.BlockSpec((k1 * d_hid_p, d_in_p), lambda b: (0, 0)),
            pl.BlockSpec((1, d_in_p), lambda b: (0, 0)),
            pl.BlockSpec((1, d_in_p), lambda b: (0, 0)),
            pl.BlockSpec((1, d_in_p), lambda b: (0, 0)),
        ],
        out_specs=pl.BlockSpec((Bt, T, d_in_p), lambda b: (b, 0, 0)),
        scratch_shapes=scratch,
        compiler_params=pltpu.CompilerParams(
            dimension_semantics=("parallel",),
            vmem_limit_bytes=48 * 1024 * 1024,
        ),
    )(x_p, w1_flat, b1_p, w2_flat, b2_p, g_p, be_p)

    return out_p if d_in_p == d_in else out_p[..., :d_in]


def reference_ffn(x, w1_oik, b1, w2_oik, b2, gamma, beta, *, padding, eps=1e-5):
    """Pure-JAX reference mirroring the PyTorch forward (eval mode, f32)."""
    mean = jnp.mean(x, axis=-1, keepdims=True)
    var = jnp.mean((x - mean) ** 2, axis=-1, keepdims=True)
    y = (x - mean) / jnp.sqrt(var + eps) * gamma + beta
    y = jnp.transpose(y, (0, 2, 1))                             # (B, C, T)
    dn = ("NCH", "OIH", "NCH")
    h = lax.conv_general_dilated(y, w1_oik, (1,), [(padding[0], padding[0])],
                                 dimension_numbers=dn) + b1[None, :, None]
    h = jnp.maximum(h, 0.0)
    o = lax.conv_general_dilated(h, w2_oik, (1,), [(padding[1], padding[1])],
                                 dimension_numbers=dn) + b2[None, :, None]
    return jnp.transpose(o, (0, 2, 1)) + x


if __name__ == "__main__":
    configs = [
        # FastSpeech2-style conv FFT block (k1 == 1 path)
        dict(B=2, T=16, d_in=32, d_hid=64, ksz=(3, 1), pad=(1, 0)),
        # general case: both convs have k > 1 (exercises the second im2col path)
        dict(B=2, T=16, d_in=32, d_hid=64, ksz=(3, 3), pad=(1, 1)),
    ]

    key = jax.random.PRNGKey(0)
    for cfg in configs:
        B, T = cfg["B"], cfg["T"]
        d_in, d_hid = cfg["d_in"], cfg["d_hid"]
        ksz, pad = cfg["ksz"], cfg["pad"]

        key, k_x, k_w1, k_b1, k_w2, k_b2 = jax.random.split(key, 6)
        x = jax.random.normal(k_x, (B, T, d_in), jnp.float32)

        # PyTorch Conv1d-style uniform init bounds; weight layout (out, in, k).
        bound1 = 1.0 / (d_in * ksz[0]) ** 0.5
        bound2 = 1.0 / (d_hid * ksz[1]) ** 0.5
        w1_oik = jax.random.uniform(k_w1, (d_hid, d_in, ksz[0]),
                                    jnp.float32, -bound1, bound1)
        b1 = jax.random.uniform(k_b1, (d_hid,), jnp.float32, -bound1, bound1)
        w2_oik = jax.random.uniform(k_w2, (d_in, d_hid, ksz[1]),
                                    jnp.float32, -bound2, bound2)
        b2 = jax.random.uniform(k_b2, (d_in,), jnp.float32, -bound2, bound2)
        gamma = jnp.ones((d_in,), jnp.float32)   # nn.LayerNorm default affine
        beta = jnp.zeros((d_in,), jnp.float32)

        out = positionwise_ffn(x, w1_oik, b1, w2_oik, b2, gamma, beta,
                               padding=pad)
        out = jax.block_until_ready(out)

        ref = reference_ffn(x, w1_oik, b1, w2_oik, b2, gamma, beta, padding=pad)
        assert out.shape == (B, T, d_in) and out.dtype == jnp.float32
        # bf16 MXU matmuls with f32 accumulation -> slightly looser tolerance
        # than a pure-f32 kernel.
        err = float(jnp.max(jnp.abs(out - ref)))
        assert jnp.allclose(out, ref, atol=3e-2, rtol=3e-2), \
            f"mismatch vs reference for cfg {cfg}: max abs err {err}"

    print("KERNEL_OK")
</pallas_src>

<mosaic_0001>
module attributes {stable_mosaic.version = 11 : i64} {
  func.func @kernel(%arg0: i32, %arg1: memref<2x16x128xf32, #tpu.memory_space<vmem>>, %arg2: memref<384x128xbf16, #tpu.memory_space<vmem>>, %arg3: memref<1x128xf32, #tpu.memory_space<vmem>>, %arg4: memref<128x128xbf16, #tpu.memory_space<vmem>>, %arg5: memref<1x128xf32, #tpu.memory_space<vmem>>, %arg6: memref<1x128xf32, #tpu.memory_space<vmem>>, %arg7: memref<1x128xf32, #tpu.memory_space<vmem>>, %arg8: memref<2x16x128xf32, #tpu.memory_space<vmem>>, %arg9: memref<2x18x128xf32, #tpu.memory_space<vmem>>) attributes {dimension_semantics = [#tpu.dimension_semantics<parallel>], iteration_bounds = array<i64: 1>, scalar_prefetch = 0 : i64, scratch_operands = 1 : i64, tpu.core_type = #tpu.core_type<tc>, window_params = [{transform_indices = @transform_0, window_bounds = array<i64: 2, 16, 128>}, {pipeline_mode = #tpu.pipeline_mode<synchronous>, transform_indices = @transform_1, window_bounds = array<i64: 384, 128>}, {pipeline_mode = #tpu.pipeline_mode<synchronous>, transform_indices = @transform_2, window_bounds = array<i64: 1, 128>}, {pipeline_mode = #tpu.pipeline_mode<synchronous>, transform_indices = @transform_3, window_bounds = array<i64: 128, 128>}, {pipeline_mode = #tpu.pipeline_mode<synchronous>, transform_indices = @transform_4, window_bounds = array<i64: 1, 128>}, {pipeline_mode = #tpu.pipeline_mode<synchronous>, transform_indices = @transform_5, window_bounds = array<i64: 1, 128>}, {pipeline_mode = #tpu.pipeline_mode<synchronous>, transform_indices = @transform_6, window_bounds = array<i64: 1, 128>}, {transform_indices = @transform_7, window_bounds = array<i64: 2, 16, 128>}]} {
    %c0 = arith.constant 0 : index
    %c0_0 = arith.constant 0 : index
    %c0_1 = arith.constant 0 : index
    %0 = vector.load %arg1[%c0, %c0_0, %c0_1] : memref<2x16x128xf32, #tpu.memory_space<vmem>>, vector<2x16x128xf32>
    %cst = arith.constant dense<0.000000e+00> : vector<2x16xf32>
    %1 = vector.multi_reduction <add>, %0, %cst [2] : vector<2x16x128xf32> to vector<2x16xf32>
    %2 = vector.shape_cast %1 : vector<2x16xf32> to vector<2x16x1xf32>
    %cst_2 = arith.constant 3.125000e-02 : f32
    %3 = vector.broadcast %cst_2 : f32 to vector<2x16x1xf32>
    %4 = arith.mulf %2, %3 : vector<2x16x1xf32>
    %5 = vector.broadcast %4 : vector<2x16x1xf32> to vector<2x16x128xf32>
    %6 = arith.subf %0, %5 : vector<2x16x128xf32>
    %7 = tpu.iota {dimensions = array<i32: 2>} : vector<2x16x128xi32>
    %c32_i32 = arith.constant 32 : i32
    %8 = vector.broadcast %c32_i32 : i32 to vector<2x16x128xi32>
    %9 = arith.cmpi slt, %7, %8 : vector<2x16x128xi32>
    %cst_3 = arith.constant 0.000000e+00 : f32
    %10 = vector.broadcast %cst_3 : f32 to vector<2x16x128xf32>
    %11 = arith.select %9, %6, %10 : vector<2x16x128xi1>, vector<2x16x128xf32>
    %12 = arith.mulf %11, %11 : vector<2x16x128xf32>
    %cst_4 = arith.constant dense<0.000000e+00> : vector<2x16xf32>
    %13 = vector.multi_reduction <add>, %12, %cst_4 [2] : vector<2x16x128xf32> to vector<2x16xf32>
    %14 = vector.shape_cast %13 : vector<2x16xf32> to vector<2x16x1xf32>
    %cst_5 = arith.constant 3.125000e-02 : f32
    %15 = vector.broadcast %cst_5 : f32 to vector<2x16x1xf32>
    %16 = arith.mulf %14, %15 : vector<2x16x1xf32>
    %cst_6 = arith.constant 9.99999974E-6 : f32
    %17 = vector.broadcast %cst_6 : f32 to vector<2x16x1xf32>
    %18 = arith.addf %16, %17 : vector<2x16x1xf32>
    %19 = math.rsqrt %18 : vector<2x16x1xf32>
    %20 = vector.broadcast %19 : vector<2x16x1xf32> to vector<2x16x128xf32>
    %21 = arith.mulf %11, %20 : vector<2x16x128xf32>
    %c0_7 = arith.constant 0 : index
    %c0_8 = arith.constant 0 : index
    %22 = vector.load %arg6[%c0_7, %c0_8] : memref<1x128xf32, #tpu.memory_space<vmem>>, vector<1x128xf32>
    %23 = vector.shape_cast %22 : vector<1x128xf32> to vector<1x1x128xf32>
    %24 = vector.broadcast %23 : vector<1x1x128xf32> to vector<2x16x128xf32>
    %25 = arith.mulf %21, %24 : vector<2x16x128xf32>
    %c0_9 = arith.constant 0 : index
    %c0_10 = arith.constant 0 : index
    %26 = vector.load %arg7[%c0_9, %c0_10] : memref<1x128xf32, #tpu.memory_space<vmem>>, vector<1x128xf32>
    %27 = vector.shape_cast %26 : vector<1x128xf32> to vector<1x1x128xf32>
    %28 = vector.broadcast %27 : vector<1x1x128xf32> to vector<2x16x128xf32>
    %29 = arith.addf %25, %28 : vector<2x16x128xf32>
    %cst_11 = arith.constant 0.000000e+00 : f32
    %30 = vector.broadcast %cst_11 : f32 to vector<2x1x128xf32>
    %c0_12 = arith.constant 0 : index
    %c0_13 = arith.constant 0 : index
    %c0_14 = arith.constant 0 : index
    %31 = vector.load %arg9[%c0_12, %c0_13, %c0_14] : memref<2x18x128xf32, #tpu.memory_space<vmem>>, vector<2x1x128xf32>
    tpu.vector_store %arg9[%c0_12, %c0_13, %c0_14], %30 {strides = array<i32>} : memref<2x18x128xf32, #tpu.memory_space<vmem>>, vector<2x1x128xf32>,
    %c0_15 = arith.constant 0 : index
    %c17 = arith.constant 17 : index
    %c0_16 = arith.constant 0 : index
    %32 = vector.load %arg9[%c0_15, %c17, %c0_16] : memref<2x18x128xf32, #tpu.memory_space<vmem>>, vector<2x1x128xf32>
    tpu.vector_store %arg9[%c0_15, %c17, %c0_16], %30 {strides = array<i32>} : memref<2x18x128xf32, #tpu.memory_space<vmem>>, vector<2x1x128xf32>,
    %c0_17 = arith.constant 0 : index
    %c1 = arith.constant 1 : index
    %c0_18 = arith.constant 0 : index
    %33 = vector.load %arg9[%c0_17, %c1, %c0_18] : memref<2x18x128xf32, #tpu.memory_space<vmem>>, vector<2x16x128xf32>
    tpu.vector_store %arg9[%c0_17, %c1, %c0_18], %29 {strides = array<i32>} : memref<2x18x128xf32, #tpu.memory_space<vmem>>, vector<2x16x128xf32>,
    %c0_19 = arith.constant 0 : index
    %c0_20 = arith.constant 0 : index
    %c0_21 = arith.constant 0 : index
    %34 = vector.load %arg9[%c0_19, %c0_20, %c0_21] : memref<2x18x128xf32, #tpu.memory_space<vmem>>, vector<2x16x128xf32>
    %35 = arith.truncf %34 : vector<2x16x128xf32> to vector<2x16x128xbf16>
    %c0_22 = arith.constant 0 : index
    %c1_23 = arith.constant 1 : index
    %c0_24 = arith.constant 0 : index
    %36 = vector.load %arg9[%c0_22, %c1_23, %c0_24] : memref<2x18x128xf32, #tpu.memory_space<vmem>>, vector<2x16x128xf32>
    %37 = arith.truncf %36 : vector<2x16x128xf32> to vector<2x16x128xbf16>
    %c0_25 = arith.constant 0 : index
    %c2 = arith.constant 2 : index
    %c0_26 = arith.constant 0 : index
    %38 = vector.load %arg9[%c0_25, %c2, %c0_26] : memref<2x18x128xf32, #tpu.memory_space<vmem>>, vector<2x16x128xf32>
    %39 = arith.truncf %38 : vector<2x16x128xf32> to vector<2x16x128xbf16>
    %40 = tpu.concatenate %35, %37, %39 in 2 : vector<2x16x128xbf16>, vector<2x16x128xbf16>, vector<2x16x128xbf16> -> vector<2x16x384xbf16>
    %41 = vector.shape_cast %40 : vector<2x16x384xbf16> to vector<32x384xbf16>
    %c0_27 = arith.constant 0 : index
    %c0_28 = arith.constant 0 : index
    %42 = vector.load %arg2[%c0_27, %c0_28] : memref<384x128xbf16, #tpu.memory_space<vmem>>, vector<384x128xbf16>
    %cst_29 = arith.constant dense<0.000000e+00> : vector<32x128xf32>
    %43 = tpu.matmul %41, %42, %cst_29 {dimension_numbers = #tpu.dot_dimension_numbers<[1], [0], [0], [1], [0, 0, 1, 1], [], []>} : vector<32x384xbf16>, vector<384x128xbf16>, vector<32x128xf32> -> vector<32x128xf32>
    %c0_30 = arith.constant 0 : index
    %c0_31 = arith.constant 0 : index
    %44 = vector.load %arg3[%c0_30, %c0_31] : memref<1x128xf32, #tpu.memory_space<vmem>>, vector<1x128xf32>
    %45 = vector.broadcast %44 : vector<1x128xf32> to vector<32x128xf32>
    %46 = arith.addf %43, %45 : vector<32x128xf32>
    %cst_32 = arith.constant 0.000000e+00 : f32
    %47 = vector.broadcast %cst_32 : f32 to vector<32x128xf32>
    %48 = arith.maximumf %46, %47 : vector<32x128xf32>
    %49 = arith.truncf %48 : vector<32x128xf32> to vector<32x128xbf16>
    %c0_33 = arith.constant 0 : index
    %c0_34 = arith.constant 0 : index
    %50 = vector.load %arg4[%c0_33, %c0_34] : memref<128x128xbf16, #tpu.memory_space<vmem>>, vector<128x128xbf16>
    %cst_35 = arith.constant dense<0.000000e+00> : vector<32x128xf32>
    %51 = tpu.matmul %49, %50, %cst_35 {dimension_numbers = #tpu.dot_dimension_numbers<[1], [0], [0], [1], [0, 0, 1, 1], [], []>} : vector<32x128xbf16>, vector<128x128xbf16>, vector<32x128xf32> -> vector<32x128xf32>
    %52 = vector.shape_cast %51 : vector<32x128xf32> to vector<2x16x128xf32>
    %c0_36 = arith.constant 0 : index
    %c0_37 = arith.constant 0 : index
    %53 = vector.load %arg5[%c0_36, %c0_37] : memref<1x128xf32, #tpu.memory_space<vmem>>, vector<1x128xf32>
    %54 = vector.shape_cast %53 : vector<1x128xf32> to vector<1x1x128xf32>
    %55 = vector.broadcast %54 : vector<1x1x128xf32> to vector<2x16x128xf32>
    %56 = arith.addf %52, %55 : vector<2x16x128xf32>
    %57 = arith.addf %56, %0 : vector<2x16x128xf32>
    %c0_38 = arith.constant 0 : index
    %c0_39 = arith.constant 0 : index
    %c0_40 = arith.constant 0 : index
    %58 = vector.load %arg8[%c0_38, %c0_39, %c0_40] : memref<2x16x128xf32, #tpu.memory_space<vmem>>, vector<2x16x128xf32>
    tpu.vector_store %arg8[%c0_38, %c0_39, %c0_40], %57 {strides = array<i32>} : memref<2x16x128xf32, #tpu.memory_space<vmem>>, vector<2x16x128xf32>,
    return
  }
  func.func @transform_0(%arg0: i32) -> (i32, i32, i32) {
    %c0_i32 = arith.constant 0 : i32
    %c0_i32_0 = arith.constant 0 : i32
    %c0_i32_1 = arith.constant 0 : i32
    return %arg0, %c0_i32, %c0_i32_0 : i32, i32, i32
  }
  func.func @transform_1(%arg0: i32) -> (i32, i32) {
    %c0_i32 = arith.constant 0 : i32
    %c0_i32_0 = arith.constant 0 : i32
    %c0_i32_1 = arith.constant 0 : i32
    return %c0_i32, %c0_i32_0 : i32, i32
  }
  func.func @transform_2(%arg0: i32) -> (i32, i32) {
    %c0_i32 = arith.constant 0 : i32
    %c0_i32_0 = arith.constant 0 : i32
    %c0_i32_1 = arith.constant 0 : i32
    return %c0_i32, %c0_i32_0 : i32, i32
  }
  func.func @transform_3(%arg0: i32) -> (i32, i32) {
    %c0_i32 = arith.constant 0 : i32
    %c0_i32_0 = arith.constant 0 : i32
    %c0_i32_1 = arith.constant 0 : i32
    return %c0_i32, %c0_i32_0 : i32, i32
  }
  func.func @transform_4(%arg0: i32) -> (i32, i32) {
    %c0_i32 = arith.constant 0 : i32
    %c0_i32_0 = arith.constant 0 : i32
    %c0_i32_1 = arith.constant 0 : i32
    return %c0_i32, %c0_i32_0 : i32, i32
  }
  func.func @transform_5(%arg0: i32) -> (i32, i32) {
    %c0_i32 = arith.constant 0 : i32
    %c0_i32_0 = arith.constant 0 : i32
    %c0_i32_1 = arith.constant 0 : i32
    return %c0_i32, %c0_i32_0 : i32, i32
  }
  func.func @transform_6(%arg0: i32) -> (i32, i32) {
    %c0_i32 = arith.constant 0 : i32
    %c0_i32_0 = arith.constant 0 : i32
    %c0_i32_1 = arith.constant 0 : i32
    return %c0_i32, %c0_i32_0 : i32, i32
  }
  func.func @transform_7(%arg0: i32) -> (i32, i32, i32) {
    %c0_i32 = arith.constant 0 : i32
    %c0_i32_0 = arith.constant 0 : i32
    %c0_i32_1 = arith.constant 0 : i32
    return %arg0, %c0_i32, %c0_i32_0 : i32, i32, i32
  }
}

</mosaic_0001>

<llo_original>
// kernel: tpu_custom_call.1
$region0: #{tpu_custom_call.1}
  #allocation0 [shape = 'u32[]', space=smem, size = 0x4, offset = 0x4, fixed_abs, tag = 'smem constant byte address 0x4 - core index']
  #allocation1 [shape = 'u32[144,128]{1,0:T(1,128)}', space=vmem, size = 0x12000, scoped, tag = 'internal scratch']
  #allocation2 [shape = 'f32[2,18,128]{2,1,0:T(8,128)}', space=vmem, size = 0x6000, scoped, tag = 'scratch operand']
  %s0 = inlined_call_operand.hbm [shape: f32[2,16,128], index: 0, kind: input, shape index: {}]
  %s1 = inlined_call_operand.hbm [shape: bf16[384,128], index: 1, kind: input, shape index: {}]
  %s2 = inlined_call_operand.vmem [shape: f32[1,128], index: 2, kind: input, shape index: {}]
  %s3 = inlined_call_operand.hbm [shape: bf16[128,128], index: 3, kind: input, shape index: {}]
  %s4 = inlined_call_operand.vmem [shape: f32[1,128], index: 4, kind: input, shape index: {}]
  %s5 = inlined_call_operand.vmem [shape: f32[1,128], index: 5, kind: input, shape index: {}]
  %s6 = inlined_call_operand.vmem [shape: f32[1,128], index: 6, kind: input, shape index: {}]
  %s7 = inlined_call_operand.hbm [shape: f32[2,16,128], index: 7, kind: output, shape index: {}]
  %s8 = sld [smem:[#allocation0]]
  $region50: #{tpu_custom_call.1} parent=0
    _
  %s10 = ssub.s32 1, %s8
  %s11 = scalar_select 0, %s10, %s8
  $region1: #{tpu_custom_call.1} parent=0
    #allocation3 [shape = 'u8[16384]{0}', space=vmem, size = 0x4000, scoped, tag = 'input window, operand 0, single buffered']
    #allocation4 [shape = 's32[1]{0}', space=sflag, size = 0x4, scoped, tag = 'scoped memory for tpu_custom_call.1']
    #allocation5 [shape = 's32[1]{0}', space=sflag, size = 0x4, scoped, tag = 'scoped memory for tpu_custom_call.1']
    #allocation6 [shape = 'u8[98304]{0}', space=vmem, size = 0x18000, scoped, tag = 'input window, operand 1, single buffered']
    #allocation7 [shape = 's32[1]{0}', space=sflag, size = 0x4, scoped, tag = 'scoped memory for tpu_custom_call.1']
    #allocation8 [shape = 'u8[32768]{0}', space=vmem, size = 0x8000, scoped, tag = 'input window, operand 3, single buffered']
    #allocation9 [shape = 'u8[16384]{0}', space=vmem, size = 0x4000, scoped, tag = 'output window, operand 0, single buffered']
    %12 = vsyncpa [#allocation4], 0
    %13 = vsyncpa [#allocation7], 0
    %14 = vsyncpa [#allocation5], 0
    // Predicated region
    $region2: #{tpu_custom_call.1} parent=1 // pred_check
      _
    $region3: #{tpu_custom_call.1} parent=1 // pred_check_branch
      %16 = sbr.rel (0) target = $region5
    $region4: #{tpu_custom_call.1} parent=1 // pred_region
      %s18 = ssub.s32 512, 512
      %19 = vsyncadd [#allocation4], %s18
      %s20 = sshll.u32 [#allocation3], 4
      %s21 = int_to_ptr.vmem [resolvable:$true] %s20
      %26 = dma.hbm_to_vmem [thread:$0]  %s0, 512, %s21, [#allocation4], 128, 128, 8
    $region5: #{tpu_custom_call.1} parent=1 // pred_fallthru
      _
    // Predicated region
    $region6: #{tpu_custom_call.1} parent=1 // pred_check
      _
    $region7: #{tpu_custom_call.1} parent=1 // pred_check_branch
      %28 = sbr.rel (0) target = $region9
    $region8: #{tpu_custom_call.1} parent=1 // pred_region
      %s30 = ssub.s32 3072, 3072
      %31 = vsyncadd [#allocation7], %s30
      %s32 = sshll.u32 [#allocation6], 4
      %s33 = int_to_ptr.vmem [resolvable:$true] %s32
      %38 = dma.hbm_to_vmem [thread:$0]  %s1, 3072, %s33, [#allocation7], 64, 64, 4
    $region9: #{tpu_custom_call.1} parent=1 // pred_fallthru
      _
    // Predicated region
    $region10: #{tpu_custom_call.1} parent=1 // pred_check
      _
    $region11: #{tpu_custom_call.1} parent=1 // pred_check_branch
      %40 = sbr.rel (0) target = $region13
    $region12: #{tpu_custom_call.1} parent=1 // pred_region
      _
    $region13: #{tpu_custom_call.1} parent=1 // pred_fallthru
      _
    // Predicated region
    $region14: #{tpu_custom_call.1} parent=1 // pred_check
      _
    $region15: #{tpu_custom_call.1} parent=1 // pred_check_branch
      %42 = sbr.rel (0) target = $region17
    $region16: #{tpu_custom_call.1} parent=1 // pred_region
      %s44 = ssub.s32 1024, 1024
      %45 = vsyncadd [#allocation7], %s44
      %s46 = sshll.u32 [#allocation8], 4
      %s47 = int_to_ptr.vmem [resolvable:$true] %s46
      %52 = dma.hbm_to_vmem [thread:$0]  %s3, 1024, %s47, [#allocation7], 64, 64, 4
    $region17: #{tpu_custom_call.1} parent=1 // pred_fallthru
      _
    // Predicated region
    $region18: #{tpu_custom_call.1} parent=1 // pred_check
      _
    $region19: #{tpu_custom_call.1} parent=1 // pred_check_branch
      %54 = sbr.rel (0) target = $region21
    $region20: #{tpu_custom_call.1} parent=1 // pred_region
      _
    $region21: #{tpu_custom_call.1} parent=1 // pred_fallthru
      _
    // Predicated region
    $region22: #{tpu_custom_call.1} parent=1 // pred_check
      _
    $region23: #{tpu_custom_call.1} parent=1 // pred_check_branch
      %56 = sbr.rel (0) target = $region25
    $region24: #{tpu_custom_call.1} parent=1 // pred_region
      _
    $region25: #{tpu_custom_call.1} parent=1 // pred_fallthru
      _
    // Predicated region
    $region26: #{tpu_custom_call.1} parent=1 // pred_check
      _
    $region27: #{tpu_custom_call.1} parent=1 // pred_check_branch
      %58 = sbr.rel (0) target = $region29
    $region28: #{tpu_custom_call.1} parent=1 // pred_region
      _
    $region29: #{tpu_custom_call.1} parent=1 // pred_fallthru
      _
    // Predicated region
    $region30: #{tpu_custom_call.1} parent=1 // pred_check
      _
    $region31: #{tpu_custom_call.1} parent=1 // pred_check_branch
      %60 = sbr.rel (0) target = $region33
    $region32: #{tpu_custom_call.1} parent=1 // pred_region
      %61 = dma.done [#allocation4], 512
    $region33: #{tpu_custom_call.1} parent=1 // pred_fallthru
      _
    // Predicated region
    $region34: #{tpu_custom_call.1} parent=1 // pred_check
      _
    $region35: #{tpu_custom_call.1} parent=1 // pred_check_branch
      %63 = sbr.rel (0) target = $region37
    $region36: #{tpu_custom_call.1} parent=1 // pred_region
      %64 = dma.done [#allocation7], 3072
    $region37: #{tpu_custom_call.1} parent=1 // pred_fallthru
      _
    // Predicated region
    $region38: #{tpu_custom_call.1} parent=1 // pred_check
      _
    $region39: #{tpu_custom_call.1} parent=1 // pred_check_branch
      %66 = sbr.rel (0) target = $region41
    $region40: #{tpu_custom_call.1} parent=1 // pred_region
      %67 = dma.done [#allocation7], 1024
    $region41: #{tpu_custom_call.1} parent=1 // pred_fallthru
      _
    %v69 = vld [vmem:[#allocation3] sm:$0xff]
    %v70 = vld [vmem:[#allocation3 + $0x8] sm:$0xff]
    %v71 = vld [vmem:[#allocation3 + $0x10] sm:$0xff]
    %v72 = vld [vmem:[#allocation3 + $0x18] sm:$0xff]
    %73 = vadd.xlane.f32.xlu0 %v69
    %v74 = vpop.xlane.xlu0 %73
    %75 = vadd.xlane.f32.xlu0 %v70
    %v76 = vpop.xlane.xlu0 %75
    %77 = vadd.xlane.f32.xlu0 %v71
    %v78 = vpop.xlane.xlu0 %77
    %79 = vadd.xlane.f32.xlu0 %v72
    %v80 = vpop.xlane.xlu0 %79
    %v81 = vmul.f32 %v74, 0.03125
    %v82 = vmul.f32 %v76, 0.03125
    %v83 = vmul.f32 %v78, 0.03125
    %v84 = vmul.f32 %v80, 0.03125
    %v85 = vsub.f32 %v69, %v81
    %v86 = vsub.f32 %v70, %v82
    %v87 = vsub.f32 %v71, %v83
    %v88 = vsub.f32 %v72, %v84
    %v89 = vlaneseq
    %v90 = vand.u32 %v89, 127
    %vm91 = vcmp.lt.s32.totalorder %v90, 32
    %v92 = vsel %vm91, %v85, 0.0
    %v93 = vsel %vm91, %v86, 0.0
    %v94 = vsel %vm91, %v87, 0.0
    %v95 = vsel %vm91, %v88, 0.0
    %v96 = vmul.f32 %v92, %v92
    %v97 = vmul.f32 %v93, %v93
    %v98 = vmul.f32 %v94, %v94
    %v99 = vmul.f32 %v95, %v95
    %100 = vadd.xlane.f32.xlu0 %v96
    %v101 = vpop.xlane.xlu0 %100
    %102 = vadd.xlane.f32.xlu0 %v97
    %v103 = vpop.xlane.xlu0 %102
    %104 = vadd.xlane.f32.xlu0 %v98
    %v105 = vpop.xlane.xlu0 %104
    %106 = vadd.xlane.f32.xlu0 %v99
    %v107 = vpop.xlane.xlu0 %106
    %v108 = vmul.f32 %v101, 0.03125
    %v109 = vmul.f32 %v103, 0.03125
    %v110 = vmul.f32 %v105, 0.03125
    %v111 = vmul.f32 %v107, 0.03125
    %v112 = vadd.f32 %v108, 1e-05
    %v113 = vadd.f32 %v109, 1e-05
    %v114 = vadd.f32 %v110, 1e-05
    %v115 = vadd.f32 %v111, 1e-05
    %v116 = vrsqrt.pop %v112
    %v117 = vrsqrt.pop %v113
    %v118 = vrsqrt.pop %v114
    %v119 = vrsqrt.pop %v115
    %v120 = vmul.f32 %v92, %v116
    %v121 = vmul.f32 %v93, %v117
    %v122 = vmul.f32 %v94, %v118
    %v123 = vmul.f32 %v95, %v119
    %v124 = vld [vmem:[%s5] sm:$0x1]
    %v126 = vlaneseq
    %v127 = vshrl.u32 %v126, 7
    %v128 = vsub.s32 0, %v127
    %v129 = vrot.slane %v124, %v128
    %v131 = vmul.f32 %v120, %v129
    %v132 = vmul.f32 %v121, %v129
    %v133 = vmul.f32 %v122, %v129
    %v134 = vmul.f32 %v123, %v129
    %v135 = vld [vmem:[%s6] sm:$0x1]
    %v137 = vlaneseq
    %v138 = vshrl.u32 %v137, 7
    %v139 = vsub.s32 0, %v138
    %v140 = vrot.slane %v135, %v139
    %v142 = vadd.f32 %v131, %v140
    %v143 = vadd.f32 %v132, %v140
    %v144 = vadd.f32 %v133, %v140
    %v145 = vadd.f32 %v134, %v140
    %146 = vst [vmem:[#allocation2] sm:$0x1] 0.0
    %147 = vst [vmem:[#allocation2 + $0x18] sm:$0x1] 0.0
    %148 = vst [vmem:[#allocation2 + $0x11] sm:$0x1] 0.0
    %149 = vst [vmem:[#allocation2 + $0x29] sm:$0x1] 0.0
    %150 = vst [vmem:[#allocation2 + $0x1] sm:$0xff] %v142
    %151 = vst [vmem:[#allocation2 + $0x9] sm:$0xff] %v143
    %152 = vst [vmem:[#allocation2 + $0x19] sm:$0xff] %v144
    %153 = vst [vmem:[#allocation2 + $0x21] sm:$0xff] %v145
    %v154 = vld [vmem:[#allocation2] sm:$0xff]
    %v155 = vld [vmem:[#allocation2 + $0x8] sm:$0xff]
    %v156 = vld [vmem:[#allocation2 + $0x18] sm:$0xff]
    %v157 = vld [vmem:[#allocation2 + $0x20] sm:$0xff]
    %v158 = vpack.c.bf16 %v155, %v154
    %v159 = vpack.c.bf16 %v157, %v156
    %v160 = vld [vmem:[#allocation2 + $0x1] sm:$0xff]
    %v161 = vld [vmem:[#allocation2 + $0x9] sm:$0xff]
    %v162 = vld [vmem:[#allocation2 + $0x19] sm:$0xff]
    %v163 = vld [vmem:[#allocation2 + $0x21] sm:$0xff]
    %v164 = vpack.c.bf16 %v161, %v160
    %v165 = vpack.c.bf16 %v163, %v162
    %v166 = vld [vmem:[#allocation2 + $0x2] sm:$0xff]
    %v167 = vld [vmem:[#allocation2 + $0xa] sm:$0xff]
    %v168 = vld [vmem:[#allocation2 + $0x1a] sm:$0xff]
    %v169 = vld [vmem:[#allocation2 + $0x22] sm:$0xff]
    %v170 = vpack.c.bf16 %v167, %v166
    %v171 = vpack.c.bf16 %v169, %v168
    %v172 = vld [vmem:[#allocation6] sm:$0xf]
    %v173 = vld [vmem:[#allocation6 + $0x4] sm:$0xf]
    %v174 = vld [vmem:[#allocation6 + $0x8] sm:$0xf]
    %v175 = vld [vmem:[#allocation6 + $0xc] sm:$0xf]
    %v176 = vld [vmem:[#allocation6 + $0x10] sm:$0xf]
    %v177 = vld [vmem:[#allocation6 + $0x14] sm:$0xf]
    %v178 = vld [vmem:[#allocation6 + $0x18] sm:$0xf]
    %v179 = vld [vmem:[#allocation6 + $0x1c] sm:$0xf]
    %v180 = vld [vmem:[#allocation6 + $0x20] sm:$0xf]
    %v181 = vld [vmem:[#allocation6 + $0x24] sm:$0xf]
    %v182 = vld [vmem:[#allocation6 + $0x28] sm:$0xf]
    %v183 = vld [vmem:[#allocation6 + $0x2c] sm:$0xf]
    %v184 = vld [vmem:[#allocation6 + $0x30] sm:$0xf]
    %v185 = vld [vmem:[#allocation6 + $0x34] sm:$0xf]
    %v186 = vld [vmem:[#allocation6 + $0x38] sm:$0xf]
    %v187 = vld [vmem:[#allocation6 + $0x3c] sm:$0xf]
    %v188 = vld [vmem:[#allocation6 + $0x40] sm:$0xf]
    %v189 = vld [vmem:[#allocation6 + $0x44] sm:$0xf]
    %v190 = vld [vmem:[#allocation6 + $0x48] sm:$0xf]
    %v191 = vld [vmem:[#allocation6 + $0x4c] sm:$0xf]
    %v192 = vld [vmem:[#allocation6 + $0x50] sm:$0xf]
    %v193 = vld [vmem:[#allocation6 + $0x54] sm:$0xf]
    %v194 = vld [vmem:[#allocation6 + $0x58] sm:$0xf]
    %v195 = vld [vmem:[#allocation6 + $0x5c] sm:$0xf]
    %v196 = vld [vmem:[#allocation6 + $0x60] sm:$0xf]
    %v197 = vld [vmem:[#allocation6 + $0x64] sm:$0xf]
    %v198 = vld [vmem:[#allocation6 + $0x68] sm:$0xf]
    %v199 = vld [vmem:[#allocation6 + $0x6c] sm:$0xf]
    %v200 = vld [vmem:[#allocation6 + $0x70] sm:$0xf]
    %v201 = vld [vmem:[#allocation6 + $0x74] sm:$0xf]
    %v202 = vld [vmem:[#allocation6 + $0x78] sm:$0xf]
    %v203 = vld [vmem:[#allocation6 + $0x7c] sm:$0xf]
    %v204 = vld [vmem:[#allocation6 + $0x80] sm:$0xf]
    %v205 = vld [vmem:[#allocation6 + $0x84] sm:$0xf]
    %v206 = vld [vmem:[#allocation6 + $0x88] sm:$0xf]
    %v207 = vld [vmem:[#allocation6 + $0x8c] sm:$0xf]
    %v208 = vld [vmem:[#allocation6 + $0x90] sm:$0xf]
    %v209 = vld [vmem:[#allocation6 + $0x94] sm:$0xf]
    %v210 = vld [vmem:[#allocation6 + $0x98] sm:$0xf]
    %v211 = vld [vmem:[#allocation6 + $0x9c] sm:$0xf]
    %v212 = vld [vmem:[#allocation6 + $0xa0] sm:$0xf]
    %v213 = vld [vmem:[#allocation6 + $0xa4] sm:$0xf]
    %v214 = vld [vmem:[#allocation6 + $0xa8] sm:$0xf]
    %v215 = vld [vmem:[#allocation6 + $0xac] sm:$0xf]
    %v216 = vld [vmem:[#allocation6 + $0xb0] sm:$0xf]
    %v217 = vld [vmem:[#allocation6 + $0xb4] sm:$0xf]
    %v218 = vld [vmem:[#allocation6 + $0xb8] sm:$0xf]
    %v219 = vld [vmem:[#allocation6 + $0xbc] sm:$0xf]
    %v220 = vld [vmem:[%s2] sm:$0x1]
    %v222 = vlaneseq
    %v223 = vshrl.u32 %v222, 7
    %v224 = vsub.s32 0, %v223
    %v225 = vrot.slane %v220, %v224
    %v275 = vunpack.c.l.b16 %v172
    %v276 = vunpack.c.l.b16 %v173
    %v277 = vunpack.c.l.b16 %v174
    %v278 = vunpack.c.l.b16 %v175
    %v279 = vunpack.c.l.b16 %v176
    %v280 = vunpack.c.l.b16 %v177
    %v281 = vunpack.c.l.b16 %v178
    %v282 = vunpack.c.l.b16 %v179
    %v283 = vunpack.c.l.b16 %v180
    %v284 = vunpack.c.l.b16 %v181
    %v285 = vunpack.c.l.b16 %v182
    %v286 = vunpack.c.l.b16 %v183
    %v287 = vunpack.c.l.b16 %v184
    %v288 = vunpack.c.l.b16 %v185
    %v289 = vunpack.c.l.b16 %v186
    %v290 = vunpack.c.l.b16 %v187
    %v291 = vunpack.c.l.b16 %v188
    %v292 = vunpack.c.l.b16 %v189
    %v293 = vunpack.c.l.b16 %v190
    %v294 = vunpack.c.l.b16 %v191
    %v295 = vunpack.c.l.b16 %v192
    %v296 = vunpack.c.l.b16 %v193
    %v297 = vunpack.c.l.b16 %v194
    %v298 = vunpack.c.l.b16 %v195
    %v299 = vunpack.c.l.b16 %v196
    %v300 = vunpack.c.l.b16 %v197
    %v301 = vunpack.c.l.b16 %v198
    %v302 = vunpack.c.l.b16 %v199
    %v303 = vunpack.c.l.b16 %v200
    %v304 = vunpack.c.l.b16 %v201
    %v305 = vunpack.c.l.b16 %v202
    %v306 = vunpack.c.l.b16 %v203
    %v307 = vunpack.c.l.b16 %v204
    %v308 = vunpack.c.l.b16 %v205
    %v309 = vunpack.c.l.b16 %v206
    %v310 = vunpack.c.l.b16 %v207
    %v311 = vunpack.c.l.b16 %v208
    %v312 = vunpack.c.l.b16 %v209
    %v313 = vunpack.c.l.b16 %v210
    %v314 = vunpack.c.l.b16 %v211
    %v315 = vunpack.c.l.b16 %v212
    %v316 = vunpack.c.l.b16 %v213
    %v317 = vunpack.c.l.b16 %v214
    %v318 = vunpack.c.l.b16 %v215
    %v319 = vunpack.c.l.b16 %v216
    %v320 = vunpack.c.l.b16 %v217
    %v321 = vunpack.c.l.b16 %v218
    %v322 = vunpack.c.l.b16 %v219
    %v323 = vpack.c.b16 %v276, %v275
    %v324 = vpack.c.b16 %v278, %v277
    %v325 = vpack.c.b16 %v280, %v279
    %v326 = vpack.c.b16 %v282, %v281
    %v327 = vpack.c.b16 %v284, %v283
    %v328 = vpack.c.b16 %v286, %v285
    %v329 = vpack.c.b16 %v288, %v287
    %v330 = vpack.c.b16 %v290, %v289
    %v331 = vpack.c.b16 %v292, %v291
    %v332 = vpack.c.b16 %v294, %v293
    %v333 = vpack.c.b16 %v296, %v295
    %v334 = vpack.c.b16 %v298, %v297
    %v335 = vpack.c.b16 %v300, %v299
    %v336 = vpack.c.b16 %v302, %v301
    %v337 = vpack.c.b16 %v304, %v303
    %v338 = vpack.c.b16 %v306, %v305
    %v339 = vpack.c.b16 %v308, %v307
    %v340 = vpack.c.b16 %v310, %v309
    %v341 = vpack.c.b16 %v312, %v311
    %v342 = vpack.c.b16 %v314, %v313
    %v343 = vpack.c.b16 %v316, %v315
    %v344 = vpack.c.b16 %v318, %v317
    %v345 = vpack.c.b16 %v320, %v319
    %v346 = vpack.c.b16 %v322, %v321
    %371 = vmatprep.subr.bf16.mxu0 0
    %372 = vmatpush1.bf16.msra.mxu0 %v323
    %373 = vmatprep.subr.bf16.mxu0 0
    %374 = vmatpush1.bf16.msra.mxu0 %v324
    %375 = vmatprep.subr.bf16.mxu0 0
    %376 = vmatpush1.bf16.msra.mxu0 %v325
    %377 = vmatprep.subr.bf16.mxu0 0
    %378 = vmatpush1.bf16.msra.mxu0 %v326
    %379 = vmatprep.subr.bf16.mxu0 0
    %380 = vmatpush1.bf16.msra.mxu0 %v327
    %381 = vmatprep.subr.bf16.mxu0 0
    %382 = vmatpush1.bf16.msra.mxu0 %v328
    %383 = vmatprep.subr.bf16.mxu0 0
    %384 = vmatpush1.bf16.msra.mxu0 %v329
    %385 = vmatprep.subr.bf16.mxu0 0
    %386 = vmatpush1.bf16.msra.mxu0 %v330
    %387 = vmatprep.subr.bf16.mxu0 0
    %388 = vmatpush1.bf16.msra.mxu0 %v331
    %389 = vmatprep.subr.bf16.mxu0 0
    %390 = vmatpush1.bf16.msra.mxu0 %v332
    %391 = vmatprep.subr.bf16.mxu0 0
    %392 = vmatpush1.bf16.msra.mxu0 %v333
    %393 = vmatprep.subr.bf16.mxu0 0
    %394 = vmatpush1.bf16.msra.mxu0 %v334
    %395 = vmatprep.subr.bf16.mxu0 0
    %396 = vmatpush1.bf16.msra.mxu0 %v335
    %397 = vmatprep.subr.bf16.mxu0 0
    %398 = vmatpush1.bf16.msra.mxu0 %v336
    %399 = vmatprep.subr.bf16.mxu0 0
    %400 = vmatpush1.bf16.msra.mxu0 %v337
    %401 = vmatprep.subr.bf16.mxu0 0
    %402 = vmatpush1.bf16.msra.mxu0 %v338
    %403 = vmatprep.mubr.bf16.mxu0 %v164
    %404 = vmatmul.mubr.bf16.gmra.mrb[0].mxu0 %v158
    %v405 = vpop.f32.mrb[0].mxu0
    %v406 = vadd.f32 %v225, %v405
    %v407 = vpop.f32.mrb[0].mxu0
    %v408 = vpop.f32.mrb[0].mxu0
    %v409 = vadd.f32 %v225, %v408
    %v410 = vpop.f32.mrb[0].mxu0
    %411 = vmatprep.mubr.bf16.mxu0 %v165
    %412 = vmatmul.mubr.bf16.gmra.mrb[0].mxu0 %v159
    %v413 = vpop.f32.mrb[0].mxu0
    %v414 = vadd.f32 %v225, %v413
    %v415 = vpop.f32.mrb[0].mxu0
    %v416 = vpop.f32.mrb[0].mxu0
    %v417 = vadd.f32 %v225, %v416
    %v418 = vpop.f32.mrb[0].mxu0
    %419 = vdwg.mxu0
    %420 = vmatprep.subr.bf16.mxu0 0
    %421 = vmatpush1.bf16.msra.mxu0 %v339
    %422 = vmatprep.subr.bf16.mxu0 0
    %423 = vmatpush1.bf16.msra.mxu0 %v340
    %424 = vmatprep.subr.bf16.mxu0 0
    %425 = vmatpush1.bf16.msra.mxu0 %v341
    %426 = vmatprep.subr.bf16.mxu0 0
    %427 = vmatpush1.bf16.msra.mxu0 %v342
    %428 = vmatprep.subr.bf16.mxu0 0
    %429 = vmatpush1.bf16.msra.mxu0 %v343
    %430 = vmatprep.subr.bf16.mxu0 0
    %431 = vmatpush1.bf16.msra.mxu0 %v344
    %432 = vmatprep.subr.bf16.mxu0 0
    %433 = vmatpush1.bf16.msra.mxu0 %v345
    %434 = vmatprep.subr.bf16.mxu0 0
    %435 = vmatpush1.bf16.msra.mxu0 %v346
    %436 = vmatprep.subr.bf16.mxu0 0
    %437 = vmatpush1.bf16.msra.mxu0 0
    %438 = vmatprep.subr.bf16.mxu0 0
    %439 = vmatpush1.bf16.msra.mxu0 0
    %440 = vmatprep.subr.bf16.mxu0 0
    %441 = vmatpush1.bf16.msra.mxu0 0
    %442 = vmatprep.subr.bf16.mxu0 0
    %443 = vmatpush1.bf16.msra.mxu0 0
    %444 = vmatprep.subr.bf16.mxu0 0
    %445 = vmatpush1.bf16.msra.mxu0 0
    %446 = vmatprep.subr.bf16.mxu0 0
    %447 = vmatpush1.bf16.msra.mxu0 0
    %448 = vmatprep.subr.bf16.mxu0 0
    %449 = vmatpush1.bf16.msra.mxu0 0
    %450 = vmatprep.subr.bf16.mxu0 0
    %451 = vmatpush1.bf16.msra.mxu0 0
    %452 = vmatprep.mubr.bf16.mxu0 0
    %453 = vmatmul.mubr.bf16.gmra.mrb[0].mxu0 %v170
    %v454 = vpop.f32.mrb[0].mxu0
    %v455 = vadd.f32 %v406, %v454
    %v456 = vpop.f32.mrb[0].mxu0
    %v457 = vpop.f32.mrb[0].mxu0
    %v458 = vadd.f32 %v409, %v457
    %v459 = vpop.f32.mrb[0].mxu0
    %460 = vmatprep.mubr.bf16.mxu0 0
    %461 = vmatmul.mubr.bf16.gmra.mrb[0].mxu0 %v171
    %v462 = vpop.f32.mrb[0].mxu0
    %v463 = vadd.f32 %v414, %v462
    %v464 = vpop.f32.mrb[0].mxu0
    %v465 = vpop.f32.mrb[0].mxu0
    %v466 = vadd.f32 %v417, %v465
    %v467 = vpop.f32.mrb[0].mxu0
    %468 = vdwg.mxu0
    %v469 = vmax.f32 %v455, 0.0
    %v470 = vmax.f32 %v458, 0.0
    %v471 = vmax.f32 %v463, 0.0
    %v472 = vmax.f32 %v466, 0.0
    %v473 = vpack.c.bf16 %v470, %v469
    %v474 = vpack.c.bf16 %v472, %v471
    %v475 = vld [vmem:[#allocation8] sm:$0xf]
    %v476 = vld [vmem:[#allocation8 + $0x4] sm:$0xf]
    %v477 = vld [vmem:[#allocation8 + $0x8] sm:$0xf]
    %v478 = vld [vmem:[#allocation8 + $0xc] sm:$0xf]
    %v479 = vld [vmem:[#allocation8 + $0x10] sm:$0xf]
    %v480 = vld [vmem:[#allocation8 + $0x14] sm:$0xf]
    %v481 = vld [vmem:[#allocation8 + $0x18] sm:$0xf]
    %v482 = vld [vmem:[#allocation8 + $0x1c] sm:$0xf]
    %v483 = vld [vmem:[#allocation8 + $0x20] sm:$0xf]
    %v484 = vld [vmem:[#allocation8 + $0x24] sm:$0xf]
    %v485 = vld [vmem:[#allocation8 + $0x28] sm:$0xf]
    %v486 = vld [vmem:[#allocation8 + $0x2c] sm:$0xf]
    %v487 = vld [vmem:[#allocation8 + $0x30] sm:$0xf]
    %v488 = vld [vmem:[#allocation8 + $0x34] sm:$0xf]
    %v489 = vld [vmem:[#allocation8 + $0x38] sm:$0xf]
    %v490 = vld [vmem:[#allocation8 + $0x3c] sm:$0xf]
    %v507 = vunpack.c.l.b16 %v475
    %v508 = vunpack.c.l.b16 %v476
    %v509 = vunpack.c.l.b16 %v477
    %v510 = vunpack.c.l.b16 %v478
    %v511 = vunpack.c.l.b16 %v479
    %v512 = vunpack.c.l.b16 %v480
    %v513 = vunpack.c.l.b16 %v481
    %v514 = vunpack.c.l.b16 %v482
    %v515 = vunpack.c.l.b16 %v483
    %v516 = vunpack.c.l.b16 %v484
    %v517 = vunpack.c.l.b16 %v485
    %v518 = vunpack.c.l.b16 %v486
    %v519 = vunpack.c.l.b16 %v487
    %v520 = vunpack.c.l.b16 %v488
    %v521 = vunpack.c.l.b16 %v489
    %v522 = vunpack.c.l.b16 %v490
    %v523 = vpack.c.b16 %v508, %v507
    %v524 = vpack.c.b16 %v510, %v509
    %v525 = vpack.c.b16 %v512, %v511
    %v526 = vpack.c.b16 %v514, %v513
    %v527 = vpack.c.b16 %v516, %v515
    %v528 = vpack.c.b16 %v518, %v517
    %v529 = vpack.c.b16 %v520, %v519
    %v530 = vpack.c.b16 %v522, %v521
    %539 = vmatprep.subr.bf16.mxu0 0
    %540 = vmatpush1.bf16.msra.mxu0 %v523
    %541 = vmatprep.subr.bf16.mxu0 0
    %542 = vmatpush1.bf16.msra.mxu0 %v524
    %543 = vmatprep.subr.bf16.mxu0 0
    %544 = vmatpush1.bf16.msra.mxu0 %v525
    %545 = vmatprep.subr.bf16.mxu0 0
    %546 = vmatpush1.bf16.msra.mxu0 %v526
    %547 = vmatprep.subr.bf16.mxu0 0
    %548 = vmatpush1.bf16.msra.mxu0 %v527
    %549 = vmatprep.subr.bf16.mxu0 0
    %550 = vmatpush1.bf16.msra.mxu0 %v528
    %551 = vmatprep.subr.bf16.mxu0 0
    %552 = vmatpush1.bf16.msra.mxu0 %v529
    %553 = vmatprep.subr.bf16.mxu0 0
    %554 = vmatpush1.bf16.msra.mxu0 %v530
    %555 = vmatprep.subr.bf16.mxu0 0
    %556 = vmatpush1.bf16.msra.mxu0 0
    %557 = vmatprep.subr.bf16.mxu0 0
    %558 = vmatpush1.bf16.msra.mxu0 0
    %559 = vmatprep.subr.bf16.mxu0 0
    %560 = vmatpush1.bf16.msra.mxu0 0
    %561 = vmatprep.subr.bf16.mxu0 0
    %562 = vmatpush1.bf16.msra.mxu0 0
    %563 = vmatprep.subr.bf16.mxu0 0
    %564 = vmatpush1.bf16.msra.mxu0 0
    %565 = vmatprep.subr.bf16.mxu0 0
    %566 = vmatpush1.bf16.msra.mxu0 0
    %567 = vmatprep.subr.bf16.mxu0 0
    %568 = vmatpush1.bf16.msra.mxu0 0
    %569 = vmatprep.subr.bf16.mxu0 0
    %570 = vmatpush1.bf16.msra.mxu0 0
    %571 = vmatprep.mubr.bf16.mxu0 0
    %572 = vmatmul.mubr.bf16.gmra.mrb[0].mxu0 %v473
    %v573 = vpop.f32.mrb[0].mxu0
    %v574 = vadd.f32 0.0, %v573
    %v575 = vpop.f32.mrb[0].mxu0
    %v576 = vpop.f32.mrb[0].mxu0
    %v577 = vadd.f32 0.0, %v576
    %v578 = vpop.f32.mrb[0].mxu0
    %579 = vmatprep.mubr.bf16.mxu0 0
    %580 = vmatmul.mubr.bf16.gmra.mrb[0].mxu0 %v474
    %v581 = vpop.f32.mrb[0].mxu0
    %v582 = vadd.f32 0.0, %v581
    %v583 = vpop.f32.mrb[0].mxu0
    %v584 = vpop.f32.mrb[0].mxu0
    %v585 = vadd.f32 0.0, %v584
    %v586 = vpop.f32.mrb[0].mxu0
    %587 = vdwg.mxu0
    %v588 = vld [vmem:[%s4] sm:$0x1]
    %v590 = vlaneseq
    %v591 = vshrl.u32 %v590, 7
    %v592 = vsub.s32 0, %v591
    %v593 = vrot.slane %v588, %v592
    %v595 = vadd.f32 %v574, %v593
    %v596 = vadd.f32 %v577, %v593
    %v597 = vadd.f32 %v582, %v593
    %v598 = vadd.f32 %v585, %v593
    %v599 = vadd.f32 %v595, %v69
    %v600 = vadd.f32 %v596, %v70
    %v601 = vadd.f32 %v597, %v71
    %v602 = vadd.f32 %v598, %v72
    %603 = vst [vmem:[#allocation9] sm:$0xff] %v599
    %604 = vst [vmem:[#allocation9 + $0x8] sm:$0xff] %v600
    %605 = vst [vmem:[#allocation9 + $0x10] sm:$0xff] %v601
    %606 = vst [vmem:[#allocation9 + $0x18] sm:$0xff] %v602
    // Predicated region
    $region42: #{tpu_custom_call.1} parent=1 // pred_check
      _
    $region43: #{tpu_custom_call.1} parent=1 // pred_check_branch
      %608 = sbr.rel (0) target = $region45
    $region44: #{tpu_custom_call.1} parent=1 // pred_region
      %s610 = ssub.s32 512, 512
      %611 = vsyncadd [#allocation5], %s610
      %s612 = sshll.u32 [#allocation9], 4
      %s613 = int_to_ptr.vmem [resolvable:$true] %s612
      %618 = dma.vmem_to_hbm [thread:$0]  %s613, 512, %s7, [#allocation5], 128, 128, 8
    $region45: #{tpu_custom_call.1} parent=1 // pred_fallthru
      _
    // Predicated region
    $region46: #{tpu_custom_call.1} parent=1 // pred_check
      _
    $region47: #{tpu_custom_call.1} parent=1 // pred_check_branch
      %620 = sbr.rel (0) target = $region49
    $region48: #{tpu_custom_call.1} parent=1 // pred_region
      %621 = dma.done [#allocation5], 512
    $region49: #{tpu_custom_call.1} parent=1 // pred_fallthru
      _
    %622 = vsyncpa [#allocation4], 1
    %623 = vsyncpa [#allocation7], 1
    %624 = vsyncpa [#allocation5], 1

</llo_original>
